<compile_context>
chip_gen: v7x
topology: tpu7x:2x2x1
jax: 0.10.0
libtpu: 0.0.40
codegen_flags: <defaults>
</compile_context>

<pallas_src>
import functools

import jax
import jax.numpy as jnp
from jax import lax
from jax.experimental import pallas as pl
from jax.experimental.pallas import tpu as pltpu

LN_EPS = 1e-5


# ----------------------------------------------------------------------------
# Kernel
# ----------------------------------------------------------------------------
def _withbias_layernorm_kernel(x_ref, g_ref, b_ref, o_ref, *, eps):
    # x_ref: (TP, C) rows on sublanes, channels on lanes.  I/O in native dtype,
    # all statistics / affine math in f32.
    x = x_ref[...].astype(jnp.float32)
    inv_c = 1.0 / x.shape[-1]

    mu = jnp.sum(x, axis=-1, keepdims=True) * inv_c          # XLU reduce
    d = x - mu                                                # VPU pass
    var = jnp.sum(d * d, axis=-1, keepdims=True) * inv_c      # biased variance

    rstd = lax.rsqrt(var + eps)                               # EUP slot
    scale = rstd * g_ref[...].astype(jnp.float32)             # (TP, C)
    out = d * scale + b_ref[...].astype(jnp.float32)          # one FMA pass
    o_ref[...] = out.astype(o_ref.dtype)


# ----------------------------------------------------------------------------
# Wrapper
# ----------------------------------------------------------------------------
def _round_up(v, m):
    return (v + m - 1) // m * m


def _sublane_multiple(itemsize):
    # 8 sublanes per 32-bit vreg row; sub-32-bit dtypes pack along sublanes.
    return max(8, 8 * (4 // max(1, itemsize)))


def _choose_block_rows(n_rows, n_cols, itemsize, *,
                       target_bytes=2 * 1024 * 1024, min_grid=2):
    sub = _sublane_multiple(itemsize)
    # Rows per block so the (tp, C) slab is ~target_bytes of I/O dtype.
    rows_by_bytes = max(sub, target_bytes // max(1, n_cols * itemsize))
    tp = max(sub, (rows_by_bytes // sub) * sub)
    # Keep at least `min_grid` grid steps (megacore sharding) when possible.
    if n_rows > min_grid * sub:
        tp = min(tp, _round_up(pl.cdiv(n_rows, min_grid), sub))
    # Never exceed the (sublane-rounded) row count.
    tp = min(tp, _round_up(n_rows, sub))
    return max(sub, tp)


def withbias_layernorm(x, weight, bias, *, eps=LN_EPS, block_rows=None):
    """Forward of WithBias_LayerNorm: normalize over the last dim of x."""
    orig_shape = x.shape
    c = orig_shape[-1]
    assert weight.shape == (c,) and bias.shape == (c,)

    xf = x.reshape(-1, c)                      # native dtype, lazy reshape
    rows = xf.shape[0]
    itemsize = jnp.dtype(x.dtype).itemsize
    sub = _sublane_multiple(itemsize)

    tp = block_rows if block_rows is not None else _choose_block_rows(
        rows, c, itemsize)
    tp = max(sub, (min(_round_up(tp, sub), _round_up(rows, sub)) // sub) * sub)

    grid = (pl.cdiv(rows, tp),)

    # Double-buffered working set: 2 input + 2 output blocks (+ gamma/beta).
    block_bytes = tp * c * itemsize
    vmem_needed = 4 * block_bytes + 4 * c * 4 + (1 << 20)
    cp_kwargs = {"dimension_semantics": ("parallel",)}
    if vmem_needed > 14 * 1024 * 1024:          # v5e scoped default is 16 MiB
        cp_kwargs["vmem_limit_bytes"] = int(
            min(max(vmem_needed * 3 // 2, 16 << 20), 48 << 20))

    out = pl.pallas_call(
        functools.partial(_withbias_layernorm_kernel, eps=float(eps)),
        out_shape=jax.ShapeDtypeStruct((rows, c), x.dtype),
        grid=grid,
        in_specs=[
            pl.BlockSpec((tp, c), lambda i: (i, 0)),
            pl.BlockSpec((1, c), lambda i: (0, 0)),
            pl.BlockSpec((1, c), lambda i: (0, 0)),
        ],
        out_specs=pl.BlockSpec((tp, c), lambda i: (i, 0)),
        compiler_params=pltpu.CompilerParams(**cp_kwargs),
    )(xf, weight.reshape(1, c), bias.reshape(1, c))

    return out.reshape(orig_shape)


# ----------------------------------------------------------------------------
# Pure-JAX reference (matches the PyTorch module semantics)
# ----------------------------------------------------------------------------
def layernorm_reference(x, weight, bias, eps=LN_EPS):
    x = x.astype(jnp.float32)
    mu = jnp.mean(x, axis=-1, keepdims=True)
    var = jnp.mean((x - mu) ** 2, axis=-1, keepdims=True)
    return ((x - mu) / jnp.sqrt(var + eps) * weight.astype(jnp.float32)
            + bias.astype(jnp.float32))


if __name__ == "__main__":
    key = jax.random.PRNGKey(0)
    k1, k2, k3, k4, k5 = jax.random.split(key, 5)

    # Restormer applies this LN on (B, H*W, C) tokens; pick small shapes.
    B, HW, C = 2, 16 * 16, 64
    x = jax.random.normal(k1, (B, HW, C), jnp.float32)
    weight = 1.0 + 0.05 * jax.random.normal(k2, (C,), jnp.float32)
    bias = 0.05 * jax.random.normal(k3, (C,), jnp.float32)

    # block_rows=128 forces a multi-step (pipelined) grid even at this size.
    ln = jax.jit(functools.partial(withbias_layernorm, block_rows=128))
    out = jax.block_until_ready(ln(x, weight, bias))
    assert out.shape == x.shape, out.shape
    ref = layernorm_reference(x, weight, bias)
    err = float(jnp.max(jnp.abs(out - ref)))
    if not (err < 1e-4):
        raise AssertionError(f"mismatch vs reference: max abs err {err}")

    # Ragged shape (rows not a multiple of the tile, C=48): exercises the
    # partial-last-block path (no padding, OOB stores dropped).
    x2 = jax.random.normal(k4, (3, 100, 48), jnp.float32)
    w2 = jnp.ones((48,), jnp.float32)
    b2 = jnp.zeros((48,), jnp.float32)
    ln_auto = jax.jit(withbias_layernorm)
    out2 = jax.block_until_ready(ln_auto(x2, w2, b2))
    err2 = float(jnp.max(jnp.abs(out2 - layernorm_reference(x2, w2, b2))))
    if not (err2 < 1e-4):
        raise AssertionError(f"mismatch vs reference (ragged): max abs err {err2}")

    # bf16 I/O path: native-dtype transfers, f32 math inside the kernel.
    x3 = jax.random.normal(k5, (2, 200, 48), jnp.float32).astype(jnp.bfloat16)
    out3 = jax.block_until_ready(ln_auto(x3, w2, b2))
    assert out3.dtype == jnp.bfloat16, out3.dtype
    ref3 = layernorm_reference(x3.astype(jnp.float32), w2, b2)
    err3 = float(jnp.max(jnp.abs(out3.astype(jnp.float32) - ref3)))
    if not (err3 < 5e-2):
        raise AssertionError(f"mismatch vs reference (bf16): max abs err {err3}")

    print("KERNEL_OK")
</pallas_src>

<mosaic_0001>
module attributes {stable_mosaic.version = 11 : i64} {
  func.func @_withbias_layernorm_kernel(%arg0: i32, %arg1: memref<128x64xf32, #tpu.memory_space<vmem>>, %arg2: memref<1x64xf32, #tpu.memory_space<vmem>>, %arg3: memref<1x64xf32, #tpu.memory_space<vmem>>, %arg4: memref<128x64xf32, #tpu.memory_space<vmem>>) attributes {dimension_semantics = [#tpu.dimension_semantics<parallel>], iteration_bounds = array<i64: 4>, scalar_prefetch = 0 : i64, scratch_operands = 0 : i64, tpu.core_type = #tpu.core_type<tc>, window_params = [{transform_indices = @transform_0, window_bounds = array<i64: 128, 64>}, {pipeline_mode = #tpu.pipeline_mode<synchronous>, transform_indices = @transform_1, window_bounds = array<i64: 1, 64>}, {pipeline_mode = #tpu.pipeline_mode<synchronous>, transform_indices = @transform_2, window_bounds = array<i64: 1, 64>}, {transform_indices = @transform_3, window_bounds = array<i64: 128, 64>}]} {
    %c0 = arith.constant 0 : index
    %c0_0 = arith.constant 0 : index
    %0 = vector.load %arg1[%c0, %c0_0] : memref<128x64xf32, #tpu.memory_space<vmem>>, vector<128x64xf32>
    %cst = arith.constant dense<0.000000e+00> : vector<128xf32>
    %1 = vector.multi_reduction <add>, %0, %cst [1] : vector<128x64xf32> to vector<128xf32>
    %2 = vector.shape_cast %1 : vector<128xf32> to vector<128x1xf32>
    %cst_1 = arith.constant 1.562500e-02 : f32
    %3 = vector.broadcast %cst_1 : f32 to vector<128x1xf32>
    %4 = arith.mulf %2, %3 : vector<128x1xf32>
    %5 = vector.broadcast %4 : vector<128x1xf32> to vector<128x64xf32>
    %6 = arith.subf %0, %5 : vector<128x64xf32>
    %7 = arith.mulf %6, %6 : vector<128x64xf32>
    %cst_2 = arith.constant dense<0.000000e+00> : vector<128xf32>
    %8 = vector.multi_reduction <add>, %7, %cst_2 [1] : vector<128x64xf32> to vector<128xf32>
    %9 = vector.shape_cast %8 : vector<128xf32> to vector<128x1xf32>
    %cst_3 = arith.constant 1.562500e-02 : f32
    %10 = vector.broadcast %cst_3 : f32 to vector<128x1xf32>
    %11 = arith.mulf %9, %10 : vector<128x1xf32>
    %cst_4 = arith.constant 9.99999974E-6 : f32
    %12 = vector.broadcast %cst_4 : f32 to vector<128x1xf32>
    %13 = arith.addf %11, %12 : vector<128x1xf32>
    %14 = math.rsqrt %13 : vector<128x1xf32>
    %c0_5 = arith.constant 0 : index
    %c0_6 = arith.constant 0 : index
    %15 = vector.load %arg2[%c0_5, %c0_6] : memref<1x64xf32, #tpu.memory_space<vmem>>, vector<1x64xf32>
    %16 = vector.broadcast %14 : vector<128x1xf32> to vector<128x64xf32>
    %17 = vector.broadcast %15 : vector<1x64xf32> to vector<128x64xf32>
    %18 = arith.mulf %16, %17 : vector<128x64xf32>
    %19 = arith.mulf %6, %18 : vector<128x64xf32>
    %c0_7 = arith.constant 0 : index
    %c0_8 = arith.constant 0 : index
    %20 = vector.load %arg3[%c0_7, %c0_8] : memref<1x64xf32, #tpu.memory_space<vmem>>, vector<1x64xf32>
    %21 = vector.broadcast %20 : vector<1x64xf32> to vector<128x64xf32>
    %22 = arith.addf %19, %21 : vector<128x64xf32>
    %c0_9 = arith.constant 0 : index
    %c0_10 = arith.constant 0 : index
    %23 = vector.load %arg4[%c0_9, %c0_10] : memref<128x64xf32, #tpu.memory_space<vmem>>, vector<128x64xf32>
    tpu.vector_store %arg4[%c0_9, %c0_10], %22 {strides = array<i32>} : memref<128x64xf32, #tpu.memory_space<vmem>>, vector<128x64xf32>,
    return
  }
  func.func @transform_0(%arg0: i32) -> (i32, i32) {
    %c0_i32 = arith.constant 0 : i32
    %c0_i32_0 = arith.constant 0 : i32
    return %arg0, %c0_i32 : i32, i32
  }
  func.func @transform_1(%arg0: i32) -> (i32, i32) {
    %c0_i32 = arith.constant 0 : i32
    %c0_i32_0 = arith.constant 0 : i32
    %c0_i32_1 = arith.constant 0 : i32
    return %c0_i32, %c0_i32_0 : i32, i32
  }
  func.func @transform_2(%arg0: i32) -> (i32, i32) {
    %c0_i32 = arith.constant 0 : i32
    %c0_i32_0 = arith.constant 0 : i32
    %c0_i32_1 = arith.constant 0 : i32
    return %c0_i32, %c0_i32_0 : i32, i32
  }
  func.func @transform_3(%arg0: i32) -> (i32, i32) {
    %c0_i32 = arith.constant 0 : i32
    %c0_i32_0 = arith.constant 0 : i32
    return %arg0, %c0_i32 : i32, i32
  }
}

</mosaic_0001>

<llo_original>
// kernel: withbias_layernorm.1
$region0: #{withbias_layernorm.1}
  #allocation0 [shape = 'u32[]', space=smem, size = 0x4, offset = 0x4, fixed_abs, tag = 'smem constant byte address 0x4 - core index']
  #allocation1 [shape = 'u32[144,128]{1,0:T(1,128)}', space=vmem, size = 0x12000, scoped, tag = 'internal scratch']
  %s0 = inlined_call_operand.vmem [shape: f32[512,64], index: 0, kind: input, shape index: {}]
  %s1 = inlined_call_operand.vmem [shape: f32[1,64], index: 1, kind: input, shape index: {}]
  %s2 = inlined_call_operand.vmem [shape: f32[1,64], index: 2, kind: input, shape index: {}]
  %s3 = inlined_call_operand.vmem [shape: f32[512,64], index: 3, kind: output, shape index: {}]
  %s4 = sld [smem:[#allocation0]]
  $region45: #{withbias_layernorm.1} parent=0
    _
  %s6 = ssub.s32 1, %s4
  %s7 = scalar_select 0, %s6, %s4
  loop: start=0, step=1, limit=6
  $region2: #{withbias_layernorm.1} parent=0 // loop_pre_header
    _
  $region3: #{withbias_layernorm.1} parent=0 // loop_header
    %s9 = sphi 0, %s13
    %p10 = scmp.ge.s32.totalorder %s9, 6
    %s19 = sphi 0, %s21
    %s22 = sphi 0, %s19
    %s23 = sphi 0, %s22
    %s39 = sphi 0, %s23
    %s43 = sphi 0, %s43
    %s45 = sphi 0, %s43
    %s46 = sphi 0, %s45
    %s60 = sphi 0, %s46
    %s64 = sphi 0, %s64
    %s66 = sphi 0, %s64
    %s67 = sphi 0, %s66
    %s81 = sphi 0, %s67
    %s87 = sphi 0, %s89
    %s90 = sphi 0, %s87
    %s91 = sphi 0, %s90
    %s107 = sphi 0, %s91
  $region4: #{withbias_layernorm.1} parent=0 // loop_header_branch
    %12 = sbr.rel (%p10) target = $region8
  $region5: #{withbias_layernorm.1} parent=0 // loop_body
    %s14 = ssub.s32 %s9, 1
    %s15 = ssub.s32 %s9, 2
    %s16 = sadd.s32 %s9, 1
    %s17 = ssub.s32 %s9, %s16
    %p18 = scmp.eq.s32.totalorder %s17, 0
    %s20 = sadd.s32 %s19, 1
    %s21 = scalar_select %p18, %s19, %s20
    %p24 = pneg %p18
    %p25 = scmp.eq.s32.totalorder %s9, 3
    %p26 = por %p24, %p25
    %p27 = scmp.ne.s32.totalorder %s19, %s22
    %p28 = scmp.eq.s32.totalorder %s9, 0
    %p29 = por %p27, %p28
    %p30 = scmp.ne.s32.totalorder %s19, %s22
    %p31 = scmp.eq.s32.totalorder %s14, 3
    %p32 = por %p30, %p31
    %p33 = scmp.ne.s32.totalorder %s22, %s23
    %p34 = scmp.eq.s32.totalorder %s14, 0
    %p35 = por %p33, %p34
    %p36 = scmp.ne.s32.totalorder %s22, %s23
    %p37 = scmp.eq.s32.totalorder %s15, 3
    %p38 = por %p36, %p37
    %p40 = scmp.ne.s32.totalorder %s23, %s39
    %p41 = scmp.eq.s32.totalorder %s15, 0
    %p42 = por %p40, %p41
    %s44 = sadd.s32 %s43, 1
    %p47 = scmp.eq.s32.totalorder %s9, 3
    %p48 = scmp.ne.s32.totalorder %s43, %s45
    %p49 = scmp.eq.s32.totalorder %s9, 0
    %p50 = por %p48, %p49
    %p51 = scmp.ne.s32.totalorder %s43, %s45
    %p52 = scmp.eq.s32.totalorder %s14, 3
    %p53 = por %p51, %p52
    %p54 = scmp.ne.s32.totalorder %s45, %s46
    %p55 = scmp.eq.s32.totalorder %s14, 0
    %p56 = por %p54, %p55
    %p57 = scmp.ne.s32.totalorder %s45, %s46
    %p58 = scmp.eq.s32.totalorder %s15, 3
    %p59 = por %p57, %p58
    %p61 = scmp.ne.s32.totalorder %s46, %s60
    %p62 = scmp.eq.s32.totalorder %s15, 0
    %p63 = por %p61, %p62
    %s65 = sadd.s32 %s64, 1
    %p68 = scmp.eq.s32.totalorder %s9, 3
    %p69 = scmp.ne.s32.totalorder %s64, %s66
    %p70 = scmp.eq.s32.totalorder %s9, 0
    %p71 = por %p69, %p70
    %p72 = scmp.ne.s32.totalorder %s64, %s66
    %p73 = scmp.eq.s32.totalorder %s14, 3
    %p74 = por %p72, %p73
    %p75 = scmp.ne.s32.totalorder %s66, %s67
    %p76 = scmp.eq.s32.totalorder %s14, 0
    %p77 = por %p75, %p76
    %p78 = scmp.ne.s32.totalorder %s66, %s67
    %p79 = scmp.eq.s32.totalorder %s15, 3
    %p80 = por %p78, %p79
    %p82 = scmp.ne.s32.totalorder %s67, %s81
    %p83 = scmp.eq.s32.totalorder %s15, 0
    %p84 = por %p82, %p83
    %s85 = ssub.s32 %s9, %s16
    %p86 = scmp.eq.s32.totalorder %s85, 0
    %s88 = sadd.s32 %s87, 1
    %s89 = scalar_select %p86, %s87, %s88
    %p92 = pneg %p86
    %p93 = scmp.eq.s32.totalorder %s9, 3
    %p94 = por %p92, %p93
    %p95 = scmp.ne.s32.totalorder %s87, %s90
    %p96 = scmp.eq.s32.totalorder %s9, 0
    %p97 = por %p95, %p96
    %p98 = scmp.ne.s32.totalorder %s87, %s90
    %p99 = scmp.eq.s32.totalorder %s14, 3
    %p100 = por %p98, %p99
    %p101 = scmp.ne.s32.totalorder %s90, %s91
    %p102 = scmp.eq.s32.totalorder %s14, 0
    %p103 = por %p101, %p102
    %p104 = scmp.ne.s32.totalorder %s90, %s91
    %p105 = scmp.eq.s32.totalorder %s15, 3
    %p106 = por %p104, %p105
    %p108 = scmp.ne.s32.totalorder %s91, %s107
    %p109 = scmp.eq.s32.totalorder %s15, 0
    %p110 = por %p108, %p109
    %p111 = scmp.le.s32.totalorder 1, %s9
    %p112 = scmp.lt.s32.totalorder %s9, 5
    %p113 = pnand %p111, %p112
    %p114 = pneg %p113
    // Predicated region
    $region9: #{withbias_layernorm.1} parent=5 // pred_check
      _
    $region10: #{withbias_layernorm.1} parent=5 // pred_check_branch
      %116 = sbr.rel (%p113) target = $region12
    $region11: #{withbias_layernorm.1} parent=5 // pred_region
      %s117 = ssub.s32 %s9, 1
      // Predicated region
      $region13: #{withbias_layernorm.1} parent=11 // pred_check
        %p118 = pneg %p56
      $region14: #{withbias_layernorm.1} parent=11 // pred_check_branch
        %120 = sbr.rel (%p118) target = $region16
      $region15: #{withbias_layernorm.1} parent=11 // pred_region
        _
      $region16: #{withbias_layernorm.1} parent=11 // pred_fallthru
        _
      // Predicated region
      $region17: #{withbias_layernorm.1} parent=11 // pred_check
        %p121 = pneg %p77
      $region18: #{withbias_layernorm.1} parent=11 // pred_check_branch
        %123 = sbr.rel (%p121) target = $region20
      $region19: #{withbias_layernorm.1} parent=11 // pred_region
        _
      $region20: #{withbias_layernorm.1} parent=11 // pred_fallthru
        _
    $region12: #{withbias_layernorm.1} parent=5 // pred_fallthru
      _
    %p124 = scmp.lt.s32.totalorder %s9, 4
    // Predicated region
    $region21: #{withbias_layernorm.1} parent=5 // pred_check
      %p125 = pneg %p124
    $region22: #{withbias_layernorm.1} parent=5 // pred_check_branch
      %127 = sbr.rel (%p125) target = $region24
    $region23: #{withbias_layernorm.1} parent=5 // pred_region
      // Predicated region
      $region25: #{withbias_layernorm.1} parent=23 // pred_check
        %p128 = pneg %p29
      $region26: #{withbias_layernorm.1} parent=23 // pred_check_branch
        %130 = sbr.rel (%p128) target = $region28
      $region27: #{withbias_layernorm.1} parent=23 // pred_region
        %s131 = smul.u32 16, %s9
        %p132 = scmp.lt.s32.totalorder %s131, 63
        %s133 = scalar_select %p132, %s131, 63
        %s134 = smul.addr %s133, 8
        %s135 = scalar_lea.vmem %s0, %s134
        %s136 = smul.u32 16, %s9
      $region28: #{withbias_layernorm.1} parent=23 // pred_fallthru
        _
    $region24: #{withbias_layernorm.1} parent=5 // pred_fallthru
      _
    %p137 = scmp.le.s32.totalorder 1, %s9
    %p138 = scmp.lt.s32.totalorder %s9, 5
    %p139 = pnand %p137, %p138
    %p140 = pneg %p139
    // Predicated region
    $region29: #{withbias_layernorm.1} parent=5 // pred_check
      _
    $region30: #{withbias_layernorm.1} parent=5 // pred_check_branch
      %142 = sbr.rel (%p139) target = $region32
    $region31: #{withbias_layernorm.1} parent=5 // pred_region
      %s143 = ssub.s32 %s9, 1
      %s144 = smul.u32 16, %s14
      %p145 = scmp.lt.s32.totalorder %s144, 63
      %s146 = scalar_select %p145, %s144, 63
      %s147 = smul.addr %s146, 8
      %s148 = scalar_lea.vmem %s0, %s147
      %p149 = pneg %p35
      %p150 = pneg %p32
      %p151 = pneg %p56
      %p152 = pneg %p53
      %p153 = pneg %p77
      %p154 = pneg %p74
      %p155 = pneg %p103
      %p156 = pneg %p100
      %s157 = smul.u32 16, %s14
      %p158 = scmp.lt.s32.totalorder %s157, 63
      %s159 = scalar_select %p158, %s157, 63
      %s160 = smul.addr %s159, 8
      %s161 = scalar_lea.vmem %s3, %s160
      %s162 = smul.u32 16, %s14
      %p163 = scmp.lt.s32.totalorder %s162, 63
      %s164 = scalar_select %p163, %s162, 63
      %s165 = smul.addr %s164, 8
      %s166 = scalar_lea.vmem %s0, %s165
      %s167 = smul.u32 16, %s14
      %s168 = smul.u32 16, %s14
      %p169 = scmp.lt.s32.totalorder %s168, 63
      %s170 = scalar_select %p169, %s168, 63
      %s171 = smul.addr %s170, 8
      %s172 = scalar_lea.vmem %s3, %s171
      %s173 = smul.u32 16, %s14
      %v174 = vld [vmem:[%s166] sm:$0xff]
      %v175 = vld [vmem:[%s166 + $0x8] sm:$0xff]
      %v176 = vld [vmem:[%s166 + $0x10] sm:$0xff]
      %v177 = vld [vmem:[%s166 + $0x18] sm:$0xff]
      %v178 = vld [vmem:[%s166 + $0x20] sm:$0xff]
      %v179 = vld [vmem:[%s166 + $0x28] sm:$0xff]
      %v180 = vld [vmem:[%s166 + $0x30] sm:$0xff]
      %v181 = vld [vmem:[%s166 + $0x38] sm:$0xff]
      %v182 = vld [vmem:[%s166 + $0x40] sm:$0xff]
      %v183 = vld [vmem:[%s166 + $0x48] sm:$0xff]
      %v184 = vld [vmem:[%s166 + $0x50] sm:$0xff]
      %v185 = vld [vmem:[%s166 + $0x58] sm:$0xff]
      %v186 = vld [vmem:[%s166 + $0x60] sm:$0xff]
      %v187 = vld [vmem:[%s166 + $0x68] sm:$0xff]
      %v188 = vld [vmem:[%s166 + $0x70] sm:$0xff]
      %v189 = vld [vmem:[%s166 + $0x78] sm:$0xff]
      %vm190 = vcmask 523264
      %v191 = vsel %vm190, %v174, 0.0
      %192 = vadd.xlane.f32.xlu0 %v191
      %v193 = vpop.xlane.xlu0 %192
      %v194 = vsel %vm190, %v175, 0.0
      %195 = vadd.xlane.f32.xlu0 %v194
      %v196 = vpop.xlane.xlu0 %195
      %v197 = vsel %vm190, %v176, 0.0
      %198 = vadd.xlane.f32.xlu0 %v197
      %v199 = vpop.xlane.xlu0 %198
      %v200 = vsel %vm190, %v177, 0.0
      %201 = vadd.xlane.f32.xlu0 %v200
      %v202 = vpop.xlane.xlu0 %201
      %v203 = vsel %vm190, %v178, 0.0
      %204 = vadd.xlane.f32.xlu0 %v203
      %v205 = vpop.xlane.xlu0 %204
      %v206 = vsel %vm190, %v179, 0.0
      %207 = vadd.xlane.f32.xlu0 %v206
      %v208 = vpop.xlane.xlu0 %207
      %v209 = vsel %vm190, %v180, 0.0
      %210 = vadd.xlane.f32.xlu0 %v209
      %v211 = vpop.xlane.xlu0 %210
      %v212 = vsel %vm190, %v181, 0.0
      %213 = vadd.xlane.f32.xlu0 %v212
      %v214 = vpop.xlane.xlu0 %213
      %v215 = vsel %vm190, %v182, 0.0
      %216 = vadd.xlane.f32.xlu0 %v215
      %v217 = vpop.xlane.xlu0 %216
      %v218 = vsel %vm190, %v183, 0.0
      %219 = vadd.xlane.f32.xlu0 %v218
      %v220 = vpop.xlane.xlu0 %219
      %v221 = vsel %vm190, %v184, 0.0
      %222 = vadd.xlane.f32.xlu0 %v221
      %v223 = vpop.xlane.xlu0 %222
      %v224 = vsel %vm190, %v185, 0.0
      %225 = vadd.xlane.f32.xlu0 %v224
      %v226 = vpop.xlane.xlu0 %225
      %v227 = vsel %vm190, %v186, 0.0
      %228 = vadd.xlane.f32.xlu0 %v227
      %v229 = vpop.xlane.xlu0 %228
      %v230 = vsel %vm190, %v187, 0.0
      %231 = vadd.xlane.f32.xlu0 %v230
      %v232 = vpop.xlane.xlu0 %231
      %v233 = vsel %vm190, %v188, 0.0
      %234 = vadd.xlane.f32.xlu0 %v233
      %v235 = vpop.xlane.xlu0 %234
      %v236 = vsel %vm190, %v189, 0.0
      %237 = vadd.xlane.f32.xlu0 %v236
      %v238 = vpop.xlane.xlu0 %237
      %v239 = vmul.f32 %v193, 0.015625
      %v240 = vmul.f32 %v196, 0.015625
      %v241 = vmul.f32 %v199, 0.015625
      %v242 = vmul.f32 %v202, 0.015625
      %v243 = vmul.f32 %v205, 0.015625
      %v244 = vmul.f32 %v208, 0.015625
      %v245 = vmul.f32 %v211, 0.015625
      %v246 = vmul.f32 %v214, 0.015625
      %v247 = vmul.f32 %v217, 0.015625
      %v248 = vmul.f32 %v220, 0.015625
      %v249 = vmul.f32 %v223, 0.015625
      %v250 = vmul.f32 %v226, 0.015625
      %v251 = vmul.f32 %v229, 0.015625
      %v252 = vmul.f32 %v232, 0.015625
      %v253 = vmul.f32 %v235, 0.015625
      %v254 = vmul.f32 %v238, 0.015625
      %v255 = vsub.f32 %v174, %v239
      %v256 = vsub.f32 %v175, %v240
      %v257 = vsub.f32 %v176, %v241
      %v258 = vsub.f32 %v177, %v242
      %v259 = vsub.f32 %v178, %v243
      %v260 = vsub.f32 %v179, %v244
      %v261 = vsub.f32 %v180, %v245
      %v262 = vsub.f32 %v181, %v246
      %v263 = vsub.f32 %v182, %v247
      %v264 = vsub.f32 %v183, %v248
      %v265 = vsub.f32 %v184, %v249
      %v266 = vsub.f32 %v185, %v250
      %v267 = vsub.f32 %v186, %v251
      %v268 = vsub.f32 %v187, %v252
      %v269 = vsub.f32 %v188, %v253
      %v270 = vsub.f32 %v189, %v254
      %v271 = vmul.f32 %v255, %v255
      %v272 = vmul.f32 %v256, %v256
      %v273 = vmul.f32 %v257, %v257
      %v274 = vmul.f32 %v258, %v258
      %v275 = vmul.f32 %v259, %v259
      %v276 = vmul.f32 %v260, %v260
      %v277 = vmul.f32 %v261, %v261
      %v278 = vmul.f32 %v262, %v262
      %v279 = vmul.f32 %v263, %v263
      %v280 = vmul.f32 %v264, %v264
      %v281 = vmul.f32 %v265, %v265
      %v282 = vmul.f32 %v266, %v266
      %v283 = vmul.f32 %v267, %v267
      %v284 = vmul.f32 %v268, %v268
      %v285 = vmul.f32 %v269, %v269
      %v286 = vmul.f32 %v270, %v270
      %v287 = vsel %vm190, %v271, 0.0
      %288 = vadd.xlane.f32.xlu0 %v287
      %v289 = vpop.xlane.xlu0 %288
      %v290 = vsel %vm190, %v272, 0.0
      %291 = vadd.xlane.f32.xlu0 %v290
      %v292 = vpop.xlane.xlu0 %291
      %v293 = vsel %vm190, %v273, 0.0
      %294 = vadd.xlane.f32.xlu0 %v293
      %v295 = vpop.xlane.xlu0 %294
      %v296 = vsel %vm190, %v274, 0.0
      %297 = vadd.xlane.f32.xlu0 %v296
      %v298 = vpop.xlane.xlu0 %297
      %v299 = vsel %vm190, %v275, 0.0
      %300 = vadd.xlane.f32.xlu0 %v299
      %v301 = vpop.xlane.xlu0 %300
      %v302 = vsel %vm190, %v276, 0.0
      %303 = vadd.xlane.f32.xlu0 %v302
      %v304 = vpop.xlane.xlu0 %303
      %v305 = vsel %vm190, %v277, 0.0
      %306 = vadd.xlane.f32.xlu0 %v305
      %v307 = vpop.xlane.xlu0 %306
      %v308 = vsel %vm190, %v278, 0.0
      %309 = vadd.xlane.f32.xlu0 %v308
      %v310 = vpop.xlane.xlu0 %309
      %v311 = vsel %vm190, %v279, 0.0
      %312 = vadd.xlane.f32.xlu0 %v311
      %v313 = vpop.xlane.xlu0 %312
      %v314 = vsel %vm190, %v280, 0.0
      %315 = vadd.xlane.f32.xlu0 %v314
      %v316 = vpop.xlane.xlu0 %315
      %v317 = vsel %vm190, %v281, 0.0
      %318 = vadd.xlane.f32.xlu0 %v317
      %v319 = vpop.xlane.xlu0 %318
      %v320 = vsel %vm190, %v282, 0.0
      %321 = vadd.xlane.f32.xlu0 %v320
      %v322 = vpop.xlane.xlu0 %321
      %v323 = vsel %vm190, %v283, 0.0
      %324 = vadd.xlane.f32.xlu0 %v323
      %v325 = vpop.xlane.xlu0 %324
      %v326 = vsel %vm190, %v284, 0.0
      %327 = vadd.xlane.f32.xlu0 %v326
      %v328 = vpop.xlane.xlu0 %327
      %v329 = vsel %vm190, %v285, 0.0
      %330 = vadd.xlane.f32.xlu0 %v329
      %v331 = vpop.xlane.xlu0 %330
      %v332 = vsel %vm190, %v286, 0.0
      %333 = vadd.xlane.f32.xlu0 %v332
      %v334 = vpop.xlane.xlu0 %333
      %v335 = vmul.f32 %v289, 0.015625
      %v336 = vmul.f32 %v292, 0.015625
      %v337 = vmul.f32 %v295, 0.015625
      %v338 = vmul.f32 %v298, 0.015625
      %v339 = vmul.f32 %v301, 0.015625
      %v340 = vmul.f32 %v304, 0.015625
      %v341 = vmul.f32 %v307, 0.015625
      %v342 = vmul.f32 %v310, 0.015625
      %v343 = vmul.f32 %v313, 0.015625
      %v344 = vmul.f32 %v316, 0.015625
      %v345 = vmul.f32 %v319, 0.015625
      %v346 = vmul.f32 %v322, 0.015625
      %v347 = vmul.f32 %v325, 0.015625
      %v348 = vmul.f32 %v328, 0.015625
      %v349 = vmul.f32 %v331, 0.015625
      %v350 = vmul.f32 %v334, 0.015625
      %v351 = vadd.f32 %v335, 1e-05
      %v352 = vadd.f32 %v336, 1e-05
      %v353 = vadd.f32 %v337, 1e-05
      %v354 = vadd.f32 %v338, 1e-05
      %v355 = vadd.f32 %v339, 1e-05
      %v356 = vadd.f32 %v340, 1e-05
      %v357 = vadd.f32 %v341, 1e-05
      %v358 = vadd.f32 %v342, 1e-05
      %v359 = vadd.f32 %v343, 1e-05
      %v360 = vadd.f32 %v344, 1e-05
      %v361 = vadd.f32 %v345, 1e-05
      %v362 = vadd.f32 %v346, 1e-05
      %v363 = vadd.f32 %v347, 1e-05
      %v364 = vadd.f32 %v348, 1e-05
      %v365 = vadd.f32 %v349, 1e-05
      %v366 = vadd.f32 %v350, 1e-05
      %v367 = vrsqrt.pop %v351
      %v368 = vrsqrt.pop %v352
      %v369 = vrsqrt.pop %v353
      %v370 = vrsqrt.pop %v354
      %v371 = vrsqrt.pop %v355
      %v372 = vrsqrt.pop %v356
      %v373 = vrsqrt.pop %v357
      %v374 = vrsqrt.pop %v358
      %v375 = vrsqrt.pop %v359
      %v376 = vrsqrt.pop %v360
      %v377 = vrsqrt.pop %v361
      %v378 = vrsqrt.pop %v362
      %v379 = vrsqrt.pop %v363
      %v380 = vrsqrt.pop %v364
      %v381 = vrsqrt.pop %v365
      %v382 = vrsqrt.pop %v366
      %v383 = vld [vmem:[%s1] sm:$0x1]
      %v385 = vlaneseq
      %v386 = vshrl.u32 %v385, 7
      %v387 = vsub.s32 0, %v386
      %v388 = vrot.slane %v383, %v387
      %v390 = vmul.f32 %v367, %v388
      %v391 = vmul.f32 %v368, %v388
      %v392 = vmul.f32 %v369, %v388
      %v393 = vmul.f32 %v370, %v388
      %v394 = vmul.f32 %v371, %v388
      %v395 = vmul.f32 %v372, %v388
      %v396 = vmul.f32 %v373, %v388
      %v397 = vmul.f32 %v374, %v388
      %v398 = vmul.f32 %v375, %v388
      %v399 = vmul.f32 %v376, %v388
      %v400 = vmul.f32 %v377, %v388
      %v401 = vmul.f32 %v378, %v388
      %v402 = vmul.f32 %v379, %v388
      %v403 = vmul.f32 %v380, %v388
      %v404 = vmul.f32 %v381, %v388
      %v405 = vmul.f32 %v382, %v388
      %v406 = vmul.f32 %v255, %v390
      %v407 = vmul.f32 %v256, %v391
      %v408 = vmul.f32 %v257, %v392
      %v409 = vmul.f32 %v258, %v393
      %v410 = vmul.f32 %v259, %v394
      %v411 = vmul.f32 %v260, %v395
      %v412 = vmul.f32 %v261, %v396
      %v413 = vmul.f32 %v262, %v397
      %v414 = vmul.f32 %v263, %v398
      %v415 = vmul.f32 %v264, %v399
      %v416 = vmul.f32 %v265, %v400
      %v417 = vmul.f32 %v266, %v401
      %v418 = vmul.f32 %v267, %v402
      %v419 = vmul.f32 %v268, %v403
      %v420 = vmul.f32 %v269, %v404
      %v421 = vmul.f32 %v270, %v405
      %v422 = vld [vmem:[%s2] sm:$0x1]
      %v424 = vlaneseq
      %v425 = vshrl.u32 %v424, 7
      %v426 = vsub.s32 0, %v425
      %v427 = vrot.slane %v422, %v426
      %v429 = vadd.f32 %v406, %v427
      %v430 = vadd.f32 %v407, %v427
      %v431 = vadd.f32 %v408, %v427
      %v432 = vadd.f32 %v409, %v427
      %v433 = vadd.f32 %v410, %v427
      %v434 = vadd.f32 %v411, %v427
      %v435 = vadd.f32 %v412, %v427
      %v436 = vadd.f32 %v413, %v427
      %v437 = vadd.f32 %v414, %v427
      %v438 = vadd.f32 %v415, %v427
      %v439 = vadd.f32 %v416, %v427
      %v440 = vadd.f32 %v417, %v427
      %v441 = vadd.f32 %v418, %v427
      %v442 = vadd.f32 %v419, %v427
      %v443 = vadd.f32 %v420, %v427
      %v444 = vadd.f32 %v421, %v427
      %445 = vst.msk [vmem:[%s172] sm:$0xff] %vm190, %v429
      %446 = vst.msk [vmem:[%s172 + $0x8] sm:$0xff] %vm190, %v430
      %447 = vst.msk [vmem:[%s172 + $0x10] sm:$0xff] %vm190, %v431
      %448 = vst.msk [vmem:[%s172 + $0x18] sm:$0xff] %vm190, %v432
      %449 = vst.msk [vmem:[%s172 + $0x20] sm:$0xff] %vm190, %v433
      %450 = vst.msk [vmem:[%s172 + $0x28] sm:$0xff] %vm190, %v434
      %451 = vst.msk [vmem:[%s172 + $0x30] sm:$0xff] %vm190, %v435
      %452 = vst.msk [vmem:[%s172 + $0x38] sm:$0xff] %vm190, %v436
      %453 = vst.msk [vmem:[%s172 + $0x40] sm:$0xff] %vm190, %v437
      %454 = vst.msk [vmem:[%s172 + $0x48] sm:$0xff] %vm190, %v438
      %455 = vst.msk [vmem:[%s172 + $0x50] sm:$0xff] %vm190, %v439
      %456 = vst.msk [vmem:[%s172 + $0x58] sm:$0xff] %vm190, %v440
      %457 = vst.msk [vmem:[%s172 + $0x60] sm:$0xff] %vm190, %v441
      %458 = vst.msk [vmem:[%s172 + $0x68] sm:$0xff] %vm190, %v442
      %459 = vst.msk [vmem:[%s172 + $0x70] sm:$0xff] %vm190, %v443
      %460 = vst.msk [vmem:[%s172 + $0x78] sm:$0xff] %vm190, %v444
      %s461 = smul.u32 16, %s14
      %p462 = scmp.lt.s32.totalorder %s461, 63
      %s463 = scalar_select %p462, %s461, 63
      %s464 = smul.addr %s463, 8
      %s465 = scalar_lea.vmem %s3, %s464
      // Predicated region
      $region33: #{withbias_layernorm.1} parent=31 // pred_check
        %p466 = pneg %p100
      $region34: #{withbias_layernorm.1} parent=31 // pred_check_branch
        %468 = sbr.rel (%p466) target = $region36
      $region35: #{withbias_layernorm.1} parent=31 // pred_region
        %s469 = smul.u32 16, %s14
      $region36: #{withbias_layernorm.1} parent=31 // pred_fallthru
        _
    $region32: #{withbias_layernorm.1} parent=5 // pred_fallthru
      _
    %p470 = scmp.le.s32.totalorder 2, %s9
    // Predicated region
    $region37: #{withbias_layernorm.1} parent=5 // pred_check
      %p471 = pneg %p470
    $region38: #{withbias_layernorm.1} parent=5 // pred_check_branch
      %473 = sbr.rel (%p471) target = $region40
    $region39: #{withbias_layernorm.1} parent=5 // pred_region
      %s474 = ssub.s32 %s9, 2
      // Predicated region
      $region41: #{withbias_layernorm.1} parent=39 // pred_check
        %p475 = pneg %p106
      $region42: #{withbias_layernorm.1} parent=39 // pred_check_branch
        %477 = sbr.rel (%p475) target = $region44
      $region43: #{withbias_layernorm.1} parent=39 // pred_region
        %s478 = smul.u32 16, %s15
        %p479 = scmp.lt.s32.totalorder %s478, 63
        %s480 = scalar_select %p479, %s478, 63
        %s481 = smul.addr %s480, 8
        %s482 = scalar_lea.vmem %s3, %s481
      $region44: #{withbias_layernorm.1} parent=39 // pred_fallthru
        _
    $region40: #{withbias_layernorm.1} parent=5 // pred_fallthru
      _
  $region6: #{withbias_layernorm.1} parent=0 // loop_footer
    %s13 = sadd.s32 1, %s9
  $region7: #{withbias_layernorm.1} parent=0 // loop_footer_branch
    %8 = sbr.rel target = $region3
  $region8: #{withbias_layernorm.1} parent=0 // loop_exit
    _

</llo_original>
